<compile_context>
chip_gen: v7x
topology: tpu7x:2x2x1
jax: 0.10.0
libtpu: 0.0.40
codegen_flags: <defaults>
</compile_context>

<pallas_src>
import jax
import jax.numpy as jnp
from jax.experimental import pallas as pl
from jax.experimental.pallas import tpu as pltpu

INPUT_SIZE = 1024          # already a multiple of 128
HIDDEN = 100
NUM_CLASSES = 10
HIDDEN_PAD = 128           # 100 -> 128 (lane aligned)
OUT_PAD = 128              # 10  -> 128 (lane-dense output store)


def _round_up(x, m):
    return ((x + m - 1) // m) * m


def mlp_kernel(x_ref,
               w1_ref, b1_ref,
               w2_ref, b2_ref,
               w3_ref, b3_ref,
               w4_ref, b4_ref,
               w5_ref, b5_ref,
               o_ref):
    """Fused 5-layer MLP: bf16 matmuls on the MXU (f32 accumulation),
    bias add + ReLU in f32 on the VPU, lane-dense f32 output store."""

    def layer(h_bf16, w_ref, b_ref, relu):
        acc = jnp.dot(h_bf16, w_ref[...],
                      preferred_element_type=jnp.float32) + b_ref[...]
        if relu:
            acc = jnp.maximum(acc, 0.0)
        return acc

    h = x_ref[...]                                        # bf16 (tb, 1024)
    h = layer(h, w1_ref, b1_ref, True).astype(jnp.bfloat16)
    h = layer(h, w2_ref, b2_ref, True).astype(jnp.bfloat16)
    h = layer(h, w3_ref, b3_ref, True).astype(jnp.bfloat16)
    h = layer(h, w4_ref, b4_ref, True).astype(jnp.bfloat16)
    out = layer(h, w5_ref, b5_ref, False)                 # f32 (tb, 128)
    o_ref[...] = out.astype(o_ref.dtype)


def prepare_params(params):
    """Zero-pad hidden/output dims to 128 and cast weights to bf16.

    params: list of (W, b) with W (in, out) f32, b (1, out) f32
            (i.e. transpose of PyTorch nn.Linear's (out, in) layout).
    Returns flat list [w1, b1, ..., w5, b5] with padded shapes:
        w1 (1024,128) bf16, w2..w5 (128,128) bf16, b* (1,128) f32.
    Zero padding is exact: padded hidden channels stay 0 through bias+ReLU and
    padded weight rows contribute nothing downstream; padded output columns
    are 0 and are sliced away in the wrapper.
    """
    dims_in = [INPUT_SIZE, HIDDEN_PAD, HIDDEN_PAD, HIDDEN_PAD, HIDDEN_PAD]
    flat = []
    for li, (w, b) in enumerate(params):
        in_pad = dims_in[li]
        out_pad = HIDDEN_PAD if li < len(params) - 1 else OUT_PAD
        wp = jnp.zeros((in_pad, out_pad), jnp.float32)
        wp = wp.at[: w.shape[0], : w.shape[1]].set(w)
        bp = jnp.zeros((1, out_pad), jnp.float32)
        bp = bp.at[:, : b.shape[1]].set(b)
        flat.append(wp.astype(jnp.bfloat16))
        flat.append(bp)                                   # bias stays f32
    return flat


def digit_recognizer_forward(x, params, *, batch_tile=None):
    """x: (B, 1024) f32/bf16. params: list of (W, b), W (in, out), b (1, out).
    Returns (B, 10) f32."""
    B = x.shape[0]

    # Pick a batch tile: large enough to feed the MXU / amortize per-step
    # overhead, small enough to fit v7x's scoped VMEM comfortably.
    if batch_tile is None:
        tb = min(512, _round_up(B, 8))
    else:
        tb = batch_tile
    tb = max(8, _round_up(tb, 8))
    B_pad = _round_up(B, tb)

    x_bf16 = x.astype(jnp.bfloat16)
    if B_pad != B:
        x_bf16 = jnp.pad(x_bf16, ((0, B_pad - B), (0, 0)))

    flat_params = prepare_params(params)

    in_specs = [pl.BlockSpec((tb, INPUT_SIZE), lambda i: (i, 0))]
    for p in flat_params:
        # weights/biases are tiny: one full-extent block, constant index_map
        # so they are fetched once and stay VMEM-resident across grid steps.
        in_specs.append(pl.BlockSpec(p.shape, lambda i: (0, 0)))

    out_spec = pl.BlockSpec((tb, OUT_PAD), lambda i: (i, 0))

    out_padded = pl.pallas_call(
        mlp_kernel,
        out_shape=jax.ShapeDtypeStruct((B_pad, OUT_PAD), jnp.float32),
        grid_spec=pltpu.PrefetchScalarGridSpec(
            num_scalar_prefetch=0,
            grid=(B_pad // tb,),
            in_specs=in_specs,
            out_specs=out_spec,
        ),
        compiler_params=pltpu.CompilerParams(
            dimension_semantics=("parallel",)),
    )(x_bf16, *flat_params)

    return out_padded[:B, :NUM_CLASSES]


def init_params(key):
    """Deterministic synthetic params matching nn.Linear shapes (stored transposed)."""
    dims = [INPUT_SIZE, HIDDEN, HIDDEN, HIDDEN, HIDDEN, NUM_CLASSES]
    params = []
    for i in range(len(dims) - 1):
        key, kw, kb = jax.random.split(key, 3)
        bound = 1.0 / jnp.sqrt(dims[i])
        w = jax.random.uniform(kw, (dims[i], dims[i + 1]), jnp.float32, -bound, bound)
        b = jax.random.uniform(kb, (1, dims[i + 1]), jnp.float32, -bound, bound)
        params.append((w, b))
    return params


def reference_forward(x, params, *, quantize_bf16=False):
    """Pure-JAX reference. With quantize_bf16=True, inputs/weights are rounded
    to bf16 (matching the kernel's MXU inputs) but math is f32."""
    def q(a):
        return a.astype(jnp.bfloat16).astype(jnp.float32) if quantize_bf16 else a

    h = q(x)
    for li, (w, b) in enumerate(params):
        h = h @ q(w) + b
        if li < len(params) - 1:
            h = jnp.maximum(h, 0.0)
        h = q(h)
    return h


if __name__ == "__main__":
    key = jax.random.PRNGKey(0)
    key, kx = jax.random.split(key)
    B = 8
    x = jax.random.normal(kx, (B, INPUT_SIZE), jnp.float32)

    params = init_params(key)

    out = digit_recognizer_forward(x, params)
    out = jax.block_until_ready(out)
    assert out.shape == (B, NUM_CLASSES)

    # Compare against a reference that applies the same bf16 rounding to the
    # matmul inputs (accumulation is f32 in both), so tolerances stay tight.
    ref_q = reference_forward(x, params, quantize_bf16=True)
    assert jnp.allclose(out, ref_q, atol=2e-3, rtol=2e-3), \
        "mismatch vs bf16-rounded reference"

    # Loose sanity check against the full-precision reference.
    ref_f32 = reference_forward(x, params, quantize_bf16=False)
    assert jnp.allclose(out, ref_f32, atol=5e-2, rtol=5e-2), \
        "mismatch vs f32 reference"

    print("KERNEL_OK")
</pallas_src>

<mosaic_0001>
module attributes {stable_mosaic.version = 11 : i64} {
  func.func @mlp_kernel(%arg0: i32, %arg1: memref<8x1024xbf16, #tpu.memory_space<vmem>>, %arg2: memref<1024x128xbf16, #tpu.memory_space<vmem>>, %arg3: memref<1x128xf32, #tpu.memory_space<vmem>>, %arg4: memref<128x128xbf16, #tpu.memory_space<vmem>>, %arg5: memref<1x128xf32, #tpu.memory_space<vmem>>, %arg6: memref<128x128xbf16, #tpu.memory_space<vmem>>, %arg7: memref<1x128xf32, #tpu.memory_space<vmem>>, %arg8: memref<128x128xbf16, #tpu.memory_space<vmem>>, %arg9: memref<1x128xf32, #tpu.memory_space<vmem>>, %arg10: memref<128x128xbf16, #tpu.memory_space<vmem>>, %arg11: memref<1x128xf32, #tpu.memory_space<vmem>>, %arg12: memref<8x128xf32, #tpu.memory_space<vmem>>) attributes {dimension_semantics = [#tpu.dimension_semantics<parallel>], iteration_bounds = array<i64: 1>, scalar_prefetch = 0 : i64, scratch_operands = 0 : i64, tpu.core_type = #tpu.core_type<tc>, window_params = [{transform_indices = @transform_0, window_bounds = array<i64: 8, 1024>}, {pipeline_mode = #tpu.pipeline_mode<synchronous>, transform_indices = @transform_1, window_bounds = array<i64: 1024, 128>}, {pipeline_mode = #tpu.pipeline_mode<synchronous>, transform_indices = @transform_2, window_bounds = array<i64: 1, 128>}, {pipeline_mode = #tpu.pipeline_mode<synchronous>, transform_indices = @transform_3, window_bounds = array<i64: 128, 128>}, {pipeline_mode = #tpu.pipeline_mode<synchronous>, transform_indices = @transform_4, window_bounds = array<i64: 1, 128>}, {pipeline_mode = #tpu.pipeline_mode<synchronous>, transform_indices = @transform_5, window_bounds = array<i64: 128, 128>}, {pipeline_mode = #tpu.pipeline_mode<synchronous>, transform_indices = @transform_6, window_bounds = array<i64: 1, 128>}, {pipeline_mode = #tpu.pipeline_mode<synchronous>, transform_indices = @transform_7, window_bounds = array<i64: 128, 128>}, {pipeline_mode = #tpu.pipeline_mode<synchronous>, transform_indices = @transform_8, window_bounds = array<i64: 1, 128>}, {pipeline_mode = #tpu.pipeline_mode<synchronous>, transform_indices = @transform_9, window_bounds = array<i64: 128, 128>}, {pipeline_mode = #tpu.pipeline_mode<synchronous>, transform_indices = @transform_10, window_bounds = array<i64: 1, 128>}, {transform_indices = @transform_11, window_bounds = array<i64: 8, 128>}]} {
    %c0 = arith.constant 0 : index
    %c0_0 = arith.constant 0 : index
    %0 = vector.load %arg1[%c0, %c0_0] : memref<8x1024xbf16, #tpu.memory_space<vmem>>, vector<8x1024xbf16>
    %c0_1 = arith.constant 0 : index
    %c0_2 = arith.constant 0 : index
    %1 = vector.load %arg2[%c0_1, %c0_2] : memref<1024x128xbf16, #tpu.memory_space<vmem>>, vector<1024x128xbf16>
    %cst = arith.constant dense<0.000000e+00> : vector<8x128xf32>
    %2 = tpu.matmul %0, %1, %cst {dimension_numbers = #tpu.dot_dimension_numbers<[1], [0], [0], [1], [0, 0, 1, 1], [], []>} : vector<8x1024xbf16>, vector<1024x128xbf16>, vector<8x128xf32> -> vector<8x128xf32>
    %c0_3 = arith.constant 0 : index
    %c0_4 = arith.constant 0 : index
    %3 = vector.load %arg3[%c0_3, %c0_4] : memref<1x128xf32, #tpu.memory_space<vmem>>, vector<1x128xf32>
    %4 = vector.broadcast %3 : vector<1x128xf32> to vector<8x128xf32>
    %5 = arith.addf %2, %4 : vector<8x128xf32>
    %cst_5 = arith.constant 0.000000e+00 : f32
    %6 = vector.broadcast %cst_5 : f32 to vector<8x128xf32>
    %7 = arith.maximumf %5, %6 : vector<8x128xf32>
    %8 = arith.truncf %7 : vector<8x128xf32> to vector<8x128xbf16>
    %c0_6 = arith.constant 0 : index
    %c0_7 = arith.constant 0 : index
    %9 = vector.load %arg4[%c0_6, %c0_7] : memref<128x128xbf16, #tpu.memory_space<vmem>>, vector<128x128xbf16>
    %cst_8 = arith.constant dense<0.000000e+00> : vector<8x128xf32>
    %10 = tpu.matmul %8, %9, %cst_8 {dimension_numbers = #tpu.dot_dimension_numbers<[1], [0], [0], [1], [0, 0, 1, 1], [], []>} : vector<8x128xbf16>, vector<128x128xbf16>, vector<8x128xf32> -> vector<8x128xf32>
    %c0_9 = arith.constant 0 : index
    %c0_10 = arith.constant 0 : index
    %11 = vector.load %arg5[%c0_9, %c0_10] : memref<1x128xf32, #tpu.memory_space<vmem>>, vector<1x128xf32>
    %12 = vector.broadcast %11 : vector<1x128xf32> to vector<8x128xf32>
    %13 = arith.addf %10, %12 : vector<8x128xf32>
    %cst_11 = arith.constant 0.000000e+00 : f32
    %14 = vector.broadcast %cst_11 : f32 to vector<8x128xf32>
    %15 = arith.maximumf %13, %14 : vector<8x128xf32>
    %16 = arith.truncf %15 : vector<8x128xf32> to vector<8x128xbf16>
    %c0_12 = arith.constant 0 : index
    %c0_13 = arith.constant 0 : index
    %17 = vector.load %arg6[%c0_12, %c0_13] : memref<128x128xbf16, #tpu.memory_space<vmem>>, vector<128x128xbf16>
    %cst_14 = arith.constant dense<0.000000e+00> : vector<8x128xf32>
    %18 = tpu.matmul %16, %17, %cst_14 {dimension_numbers = #tpu.dot_dimension_numbers<[1], [0], [0], [1], [0, 0, 1, 1], [], []>} : vector<8x128xbf16>, vector<128x128xbf16>, vector<8x128xf32> -> vector<8x128xf32>
    %c0_15 = arith.constant 0 : index
    %c0_16 = arith.constant 0 : index
    %19 = vector.load %arg7[%c0_15, %c0_16] : memref<1x128xf32, #tpu.memory_space<vmem>>, vector<1x128xf32>
    %20 = vector.broadcast %19 : vector<1x128xf32> to vector<8x128xf32>
    %21 = arith.addf %18, %20 : vector<8x128xf32>
    %cst_17 = arith.constant 0.000000e+00 : f32
    %22 = vector.broadcast %cst_17 : f32 to vector<8x128xf32>
    %23 = arith.maximumf %21, %22 : vector<8x128xf32>
    %24 = arith.truncf %23 : vector<8x128xf32> to vector<8x128xbf16>
    %c0_18 = arith.constant 0 : index
    %c0_19 = arith.constant 0 : index
    %25 = vector.load %arg8[%c0_18, %c0_19] : memref<128x128xbf16, #tpu.memory_space<vmem>>, vector<128x128xbf16>
    %cst_20 = arith.constant dense<0.000000e+00> : vector<8x128xf32>
    %26 = tpu.matmul %24, %25, %cst_20 {dimension_numbers = #tpu.dot_dimension_numbers<[1], [0], [0], [1], [0, 0, 1, 1], [], []>} : vector<8x128xbf16>, vector<128x128xbf16>, vector<8x128xf32> -> vector<8x128xf32>
    %c0_21 = arith.constant 0 : index
    %c0_22 = arith.constant 0 : index
    %27 = vector.load %arg9[%c0_21, %c0_22] : memref<1x128xf32, #tpu.memory_space<vmem>>, vector<1x128xf32>
    %28 = vector.broadcast %27 : vector<1x128xf32> to vector<8x128xf32>
    %29 = arith.addf %26, %28 : vector<8x128xf32>
    %cst_23 = arith.constant 0.000000e+00 : f32
    %30 = vector.broadcast %cst_23 : f32 to vector<8x128xf32>
    %31 = arith.maximumf %29, %30 : vector<8x128xf32>
    %32 = arith.truncf %31 : vector<8x128xf32> to vector<8x128xbf16>
    %c0_24 = arith.constant 0 : index
    %c0_25 = arith.constant 0 : index
    %33 = vector.load %arg10[%c0_24, %c0_25] : memref<128x128xbf16, #tpu.memory_space<vmem>>, vector<128x128xbf16>
    %cst_26 = arith.constant dense<0.000000e+00> : vector<8x128xf32>
    %34 = tpu.matmul %32, %33, %cst_26 {dimension_numbers = #tpu.dot_dimension_numbers<[1], [0], [0], [1], [0, 0, 1, 1], [], []>} : vector<8x128xbf16>, vector<128x128xbf16>, vector<8x128xf32> -> vector<8x128xf32>
    %c0_27 = arith.constant 0 : index
    %c0_28 = arith.constant 0 : index
    %35 = vector.load %arg11[%c0_27, %c0_28] : memref<1x128xf32, #tpu.memory_space<vmem>>, vector<1x128xf32>
    %36 = vector.broadcast %35 : vector<1x128xf32> to vector<8x128xf32>
    %37 = arith.addf %34, %36 : vector<8x128xf32>
    %c0_29 = arith.constant 0 : index
    %c0_30 = arith.constant 0 : index
    %38 = vector.load %arg12[%c0_29, %c0_30] : memref<8x128xf32, #tpu.memory_space<vmem>>, vector<8x128xf32>
    tpu.vector_store %arg12[%c0_29, %c0_30], %37 {strides = array<i32>} : memref<8x128xf32, #tpu.memory_space<vmem>>, vector<8x128xf32>,
    return
  }
  func.func @transform_0(%arg0: i32) -> (i32, i32) {
    %c0_i32 = arith.constant 0 : i32
    %c0_i32_0 = arith.constant 0 : i32
    return %arg0, %c0_i32 : i32, i32
  }
  func.func @transform_1(%arg0: i32) -> (i32, i32) {
    %c0_i32 = arith.constant 0 : i32
    %c0_i32_0 = arith.constant 0 : i32
    %c0_i32_1 = arith.constant 0 : i32
    return %c0_i32, %c0_i32_0 : i32, i32
  }
  func.func @transform_2(%arg0: i32) -> (i32, i32) {
    %c0_i32 = arith.constant 0 : i32
    %c0_i32_0 = arith.constant 0 : i32
    %c0_i32_1 = arith.constant 0 : i32
    return %c0_i32, %c0_i32_0 : i32, i32
  }
  func.func @transform_3(%arg0: i32) -> (i32, i32) {
    %c0_i32 = arith.constant 0 : i32
    %c0_i32_0 = arith.constant 0 : i32
    %c0_i32_1 = arith.constant 0 : i32
    return %c0_i32, %c0_i32_0 : i32, i32
  }
  func.func @transform_4(%arg0: i32) -> (i32, i32) {
    %c0_i32 = arith.constant 0 : i32
    %c0_i32_0 = arith.constant 0 : i32
    %c0_i32_1 = arith.constant 0 : i32
    return %c0_i32, %c0_i32_0 : i32, i32
  }
  func.func @transform_5(%arg0: i32) -> (i32, i32) {
    %c0_i32 = arith.constant 0 : i32
    %c0_i32_0 = arith.constant 0 : i32
    %c0_i32_1 = arith.constant 0 : i32
    return %c0_i32, %c0_i32_0 : i32, i32
  }
  func.func @transform_6(%arg0: i32) -> (i32, i32) {
    %c0_i32 = arith.constant 0 : i32
    %c0_i32_0 = arith.constant 0 : i32
    %c0_i32_1 = arith.constant 0 : i32
    return %c0_i32, %c0_i32_0 : i32, i32
  }
  func.func @transform_7(%arg0: i32) -> (i32, i32) {
    %c0_i32 = arith.constant 0 : i32
    %c0_i32_0 = arith.constant 0 : i32
    %c0_i32_1 = arith.constant 0 : i32
    return %c0_i32, %c0_i32_0 : i32, i32
  }
  func.func @transform_8(%arg0: i32) -> (i32, i32) {
    %c0_i32 = arith.constant 0 : i32
    %c0_i32_0 = arith.constant 0 : i32
    %c0_i32_1 = arith.constant 0 : i32
    return %c0_i32, %c0_i32_0 : i32, i32
  }
  func.func @transform_9(%arg0: i32) -> (i32, i32) {
    %c0_i32 = arith.constant 0 : i32
    %c0_i32_0 = arith.constant 0 : i32
    %c0_i32_1 = arith.constant 0 : i32
    return %c0_i32, %c0_i32_0 : i32, i32
  }
  func.func @transform_10(%arg0: i32) -> (i32, i32) {
    %c0_i32 = arith.constant 0 : i32
    %c0_i32_0 = arith.constant 0 : i32
    %c0_i32_1 = arith.constant 0 : i32
    return %c0_i32, %c0_i32_0 : i32, i32
  }
  func.func @transform_11(%arg0: i32) -> (i32, i32) {
    %c0_i32 = arith.constant 0 : i32
    %c0_i32_0 = arith.constant 0 : i32
    return %arg0, %c0_i32 : i32, i32
  }
}

</mosaic_0001>

<llo_original>
// kernel: tpu_custom_call.1
$region0: #{tpu_custom_call.1}
  #allocation0 [shape = 'u32[]', space=smem, size = 0x4, offset = 0x4, fixed_abs, tag = 'smem constant byte address 0x4 - core index']
  #allocation1 [shape = 'u32[144,128]{1,0:T(1,128)}', space=vmem, size = 0x12000, scoped, tag = 'internal scratch']
  %s0 = inlined_call_operand.hbm [shape: bf16[8,1024], index: 0, kind: input, shape index: {}]
  %s1 = inlined_call_operand.hbm [shape: bf16[1024,128], index: 1, kind: input, shape index: {}]
  %s2 = inlined_call_operand.vmem [shape: f32[1,128], index: 2, kind: input, shape index: {}]
  %s3 = inlined_call_operand.hbm [shape: bf16[128,128], index: 3, kind: input, shape index: {}]
  %s4 = inlined_call_operand.vmem [shape: f32[1,128], index: 4, kind: input, shape index: {}]
  %s5 = inlined_call_operand.hbm [shape: bf16[128,128], index: 5, kind: input, shape index: {}]
  %s6 = inlined_call_operand.vmem [shape: f32[1,128], index: 6, kind: input, shape index: {}]
  %s7 = inlined_call_operand.hbm [shape: bf16[128,128], index: 7, kind: input, shape index: {}]
  %s8 = inlined_call_operand.vmem [shape: f32[1,128], index: 8, kind: input, shape index: {}]
  %s9 = inlined_call_operand.hbm [shape: bf16[128,128], index: 9, kind: input, shape index: {}]
  %s10 = inlined_call_operand.vmem [shape: f32[1,128], index: 10, kind: input, shape index: {}]
  %s11 = inlined_call_operand.hbm [shape: f32[8,128], index: 11, kind: output, shape index: {}]
  %s12 = sld [smem:[#allocation0]]
  $region78: #{tpu_custom_call.1} parent=0
    _
  %s14 = ssub.s32 1, %s12
  %s15 = scalar_select 0, %s14, %s12
  $region1: #{tpu_custom_call.1} parent=0
    #allocation2 [shape = 'u8[16384]{0}', space=vmem, size = 0x4000, scoped, tag = 'input window, operand 0, single buffered']
    #allocation3 [shape = 's32[1]{0}', space=sflag, size = 0x4, scoped, tag = 'scoped memory for tpu_custom_call.1']
    #allocation4 [shape = 's32[1]{0}', space=sflag, size = 0x4, scoped, tag = 'scoped memory for tpu_custom_call.1']
    #allocation5 [shape = 'u8[262144]{0}', space=vmem, size = 0x40000, scoped, tag = 'input window, operand 1, single buffered']
    #allocation6 [shape = 's32[1]{0}', space=sflag, size = 0x4, scoped, tag = 'scoped memory for tpu_custom_call.1']
    #allocation7 [shape = 'u8[32768]{0}', space=vmem, size = 0x8000, scoped, tag = 'input window, operand 3, single buffered']
    #allocation8 [shape = 'u8[32768]{0}', space=vmem, size = 0x8000, scoped, tag = 'input window, operand 5, single buffered']
    #allocation9 [shape = 's32[1]{0}', space=sflag, size = 0x4, scoped, tag = 'scoped memory for tpu_custom_call.1']
    #allocation10 [shape = 'u8[32768]{0}', space=vmem, size = 0x8000, scoped, tag = 'input window, operand 7, single buffered']
    #allocation11 [shape = 'u8[32768]{0}', space=vmem, size = 0x8000, scoped, tag = 'input window, operand 9, single buffered']
    #allocation12 [shape = 's32[1]{0}', space=sflag, size = 0x4, scoped, tag = 'scoped memory for tpu_custom_call.1']
    #allocation13 [shape = 'u8[4096]{0}', space=vmem, size = 0x1000, scoped, tag = 'output window, operand 0, single buffered']
    %16 = vsyncpa [#allocation3], 0
    %17 = vsyncpa [#allocation6], 0
    %18 = vsyncpa [#allocation9], 0
    %19 = vsyncpa [#allocation12], 0
    %20 = vsyncpa [#allocation4], 0
    // Predicated region
    $region2: #{tpu_custom_call.1} parent=1 // pred_check
      _
    $region3: #{tpu_custom_call.1} parent=1 // pred_check_branch
      %22 = sbr.rel (0) target = $region5
    $region4: #{tpu_custom_call.1} parent=1 // pred_region
      %s24 = ssub.s32 512, 512
      %25 = vsyncadd [#allocation3], %s24
      %s27 = sshll.u32 [#allocation2], 4
      %s28 = int_to_ptr.vmem [resolvable:$true] %s27
      %30 = dma.hbm_to_vmem [thread:$0]  %s0, 512, %s28, [#allocation3]
    $region5: #{tpu_custom_call.1} parent=1 // pred_fallthru
      _
    // Predicated region
    $region6: #{tpu_custom_call.1} parent=1 // pred_check
      _
    $region7: #{tpu_custom_call.1} parent=1 // pred_check_branch
      %32 = sbr.rel (0) target = $region9
    $region8: #{tpu_custom_call.1} parent=1 // pred_region
      %s34 = ssub.s32 8192, 8192
      %35 = vsyncadd [#allocation6], %s34
      %s36 = sshll.u32 [#allocation5], 4
      %s37 = int_to_ptr.vmem [resolvable:$true] %s36
      %42 = dma.hbm_to_vmem [thread:$0]  %s1, 8192, %s37, [#allocation6], 64, 64, 4
    $region9: #{tpu_custom_call.1} parent=1 // pred_fallthru
      _
    // Predicated region
    $region10: #{tpu_custom_call.1} parent=1 // pred_check
      _
    $region11: #{tpu_custom_call.1} parent=1 // pred_check_branch
      %44 = sbr.rel (0) target = $region13
    $region12: #{tpu_custom_call.1} parent=1 // pred_region
      _
    $region13: #{tpu_custom_call.1} parent=1 // pred_fallthru
      _
    // Predicated region
    $region14: #{tpu_custom_call.1} parent=1 // pred_check
      _
    $region15: #{tpu_custom_call.1} parent=1 // pred_check_branch
      %46 = sbr.rel (0) target = $region17
    $region16: #{tpu_custom_call.1} parent=1 // pred_region
      %s48 = ssub.s32 1024, 1024
      %49 = vsyncadd [#allocation6], %s48
      %s50 = sshll.u32 [#allocation7], 4
      %s51 = int_to_ptr.vmem [resolvable:$true] %s50
      %56 = dma.hbm_to_vmem [thread:$0]  %s3, 1024, %s51, [#allocation6], 64, 64, 4
    $region17: #{tpu_custom_call.1} parent=1 // pred_fallthru
      _
    // Predicated region
    $region18: #{tpu_custom_call.1} parent=1 // pred_check
      _
    $region19: #{tpu_custom_call.1} parent=1 // pred_check_branch
      %58 = sbr.rel (0) target = $region21
    $region20: #{tpu_custom_call.1} parent=1 // pred_region
      _
    $region21: #{tpu_custom_call.1} parent=1 // pred_fallthru
      _
    // Predicated region
    $region22: #{tpu_custom_call.1} parent=1 // pred_check
      _
    $region23: #{tpu_custom_call.1} parent=1 // pred_check_branch
      %60 = sbr.rel (0) target = $region25
    $region24: #{tpu_custom_call.1} parent=1 // pred_region
      %s62 = ssub.s32 1024, 1024
      %63 = vsyncadd [#allocation9], %s62
      %s64 = sshll.u32 [#allocation8], 4
      %s65 = int_to_ptr.vmem [resolvable:$true] %s64
      %70 = dma.hbm_to_vmem [thread:$0]  %s5, 1024, %s65, [#allocation9], 64, 64, 4
    $region25: #{tpu_custom_call.1} parent=1 // pred_fallthru
      _
    // Predicated region
    $region26: #{tpu_custom_call.1} parent=1 // pred_check
      _
    $region27: #{tpu_custom_call.1} parent=1 // pred_check_branch
      %72 = sbr.rel (0) target = $region29
    $region28: #{tpu_custom_call.1} parent=1 // pred_region
      _
    $region29: #{tpu_custom_call.1} parent=1 // pred_fallthru
      _
    // Predicated region
    $region30: #{tpu_custom_call.1} parent=1 // pred_check
      _
    $region31: #{tpu_custom_call.1} parent=1 // pred_check_branch
      %74 = sbr.rel (0) target = $region33
    $region32: #{tpu_custom_call.1} parent=1 // pred_region
      %s76 = ssub.s32 1024, 1024
      %77 = vsyncadd [#allocation9], %s76
      %s78 = sshll.u32 [#allocation10], 4
      %s79 = int_to_ptr.vmem [resolvable:$true] %s78
      %84 = dma.hbm_to_vmem [thread:$0]  %s7, 1024, %s79, [#allocation9], 64, 64, 4
    $region33: #{tpu_custom_call.1} parent=1 // pred_fallthru
      _
    // Predicated region
    $region34: #{tpu_custom_call.1} parent=1 // pred_check
      _
    $region35: #{tpu_custom_call.1} parent=1 // pred_check_branch
      %86 = sbr.rel (0) target = $region37
    $region36: #{tpu_custom_call.1} parent=1 // pred_region
      _
    $region37: #{tpu_custom_call.1} parent=1 // pred_fallthru
      _
    // Predicated region
    $region38: #{tpu_custom_call.1} parent=1 // pred_check
      _
    $region39: #{tpu_custom_call.1} parent=1 // pred_check_branch
      %88 = sbr.rel (0) target = $region41
    $region40: #{tpu_custom_call.1} parent=1 // pred_region
      %s90 = ssub.s32 1024, 1024
      %91 = vsyncadd [#allocation12], %s90
      %s92 = sshll.u32 [#allocation11], 4
      %s93 = int_to_ptr.vmem [resolvable:$true] %s92
      %98 = dma.hbm_to_vmem [thread:$0]  %s9, 1024, %s93, [#allocation12], 64, 64, 4
    $region41: #{tpu_custom_call.1} parent=1 // pred_fallthru
      _
    // Predicated region
    $region42: #{tpu_custom_call.1} parent=1 // pred_check
      _
    $region43: #{tpu_custom_call.1} parent=1 // pred_check_branch
      %100 = sbr.rel (0) target = $region45
    $region44: #{tpu_custom_call.1} parent=1 // pred_region
      _
    $region45: #{tpu_custom_call.1} parent=1 // pred_fallthru
      _
    // Predicated region
    $region46: #{tpu_custom_call.1} parent=1 // pred_check
      _
    $region47: #{tpu_custom_call.1} parent=1 // pred_check_branch
      %102 = sbr.rel (0) target = $region49
    $region48: #{tpu_custom_call.1} parent=1 // pred_region
      %103 = dma.done [#allocation3], 512
    $region49: #{tpu_custom_call.1} parent=1 // pred_fallthru
      _
    // Predicated region
    $region50: #{tpu_custom_call.1} parent=1 // pred_check
      _
    $region51: #{tpu_custom_call.1} parent=1 // pred_check_branch
      %105 = sbr.rel (0) target = $region53
    $region52: #{tpu_custom_call.1} parent=1 // pred_region
      %106 = dma.done [#allocation6], 8192
    $region53: #{tpu_custom_call.1} parent=1 // pred_fallthru
      _
    // Predicated region
    $region54: #{tpu_custom_call.1} parent=1 // pred_check
      _
    $region55: #{tpu_custom_call.1} parent=1 // pred_check_branch
      %108 = sbr.rel (0) target = $region57
    $region56: #{tpu_custom_call.1} parent=1 // pred_region
      %109 = dma.done [#allocation6], 1024
    $region57: #{tpu_custom_call.1} parent=1 // pred_fallthru
      _
    // Predicated region
    $region58: #{tpu_custom_call.1} parent=1 // pred_check
      _
    $region59: #{tpu_custom_call.1} parent=1 // pred_check_branch
      %111 = sbr.rel (0) target = $region61
    $region60: #{tpu_custom_call.1} parent=1 // pred_region
      %112 = dma.done [#allocation9], 1024
    $region61: #{tpu_custom_call.1} parent=1 // pred_fallthru
      _
    // Predicated region
    $region62: #{tpu_custom_call.1} parent=1 // pred_check
      _
    $region63: #{tpu_custom_call.1} parent=1 // pred_check_branch
      %114 = sbr.rel (0) target = $region65
    $region64: #{tpu_custom_call.1} parent=1 // pred_region
      %115 = dma.done [#allocation9], 1024
    $region65: #{tpu_custom_call.1} parent=1 // pred_fallthru
      _
    // Predicated region
    $region66: #{tpu_custom_call.1} parent=1 // pred_check
      _
    $region67: #{tpu_custom_call.1} parent=1 // pred_check_branch
      %117 = sbr.rel (0) target = $region69
    $region68: #{tpu_custom_call.1} parent=1 // pred_region
      %118 = dma.done [#allocation12], 1024
    $region69: #{tpu_custom_call.1} parent=1 // pred_fallthru
      _
    %v120 = vld [vmem:[#allocation2] sm:$0xff]
    %v121 = vld [vmem:[#allocation2 + $0x8] sm:$0xff]
    %v122 = vld [vmem:[#allocation2 + $0x10] sm:$0xff]
    %v123 = vld [vmem:[#allocation2 + $0x18] sm:$0xff]
    %v124 = vld [vmem:[#allocation5] sm:$0xf]
    %v125 = vld [vmem:[#allocation5 + $0x4] sm:$0xf]
    %v126 = vld [vmem:[#allocation5 + $0x8] sm:$0xf]
    %v127 = vld [vmem:[#allocation5 + $0xc] sm:$0xf]
    %v128 = vld [vmem:[#allocation5 + $0x10] sm:$0xf]
    %v129 = vld [vmem:[#allocation5 + $0x14] sm:$0xf]
    %v130 = vld [vmem:[#allocation5 + $0x18] sm:$0xf]
    %v131 = vld [vmem:[#allocation5 + $0x1c] sm:$0xf]
    %v132 = vld [vmem:[#allocation5 + $0x20] sm:$0xf]
    %v133 = vld [vmem:[#allocation5 + $0x24] sm:$0xf]
    %v134 = vld [vmem:[#allocation5 + $0x28] sm:$0xf]
    %v135 = vld [vmem:[#allocation5 + $0x2c] sm:$0xf]
    %v136 = vld [vmem:[#allocation5 + $0x30] sm:$0xf]
    %v137 = vld [vmem:[#allocation5 + $0x34] sm:$0xf]
    %v138 = vld [vmem:[#allocation5 + $0x38] sm:$0xf]
    %v139 = vld [vmem:[#allocation5 + $0x3c] sm:$0xf]
    %v140 = vld [vmem:[#allocation5 + $0x40] sm:$0xf]
    %v141 = vld [vmem:[#allocation5 + $0x44] sm:$0xf]
    %v142 = vld [vmem:[#allocation5 + $0x48] sm:$0xf]
    %v143 = vld [vmem:[#allocation5 + $0x4c] sm:$0xf]
    %v144 = vld [vmem:[#allocation5 + $0x50] sm:$0xf]
    %v145 = vld [vmem:[#allocation5 + $0x54] sm:$0xf]
    %v146 = vld [vmem:[#allocation5 + $0x58] sm:$0xf]
    %v147 = vld [vmem:[#allocation5 + $0x5c] sm:$0xf]
    %v148 = vld [vmem:[#allocation5 + $0x60] sm:$0xf]
    %v149 = vld [vmem:[#allocation5 + $0x64] sm:$0xf]
    %v150 = vld [vmem:[#allocation5 + $0x68] sm:$0xf]
    %v151 = vld [vmem:[#allocation5 + $0x6c] sm:$0xf]
    %v152 = vld [vmem:[#allocation5 + $0x70] sm:$0xf]
    %v153 = vld [vmem:[#allocation5 + $0x74] sm:$0xf]
    %v154 = vld [vmem:[#allocation5 + $0x78] sm:$0xf]
    %v155 = vld [vmem:[#allocation5 + $0x7c] sm:$0xf]
    %v156 = vld [vmem:[#allocation5 + $0x80] sm:$0xf]
    %v157 = vld [vmem:[#allocation5 + $0x84] sm:$0xf]
    %v158 = vld [vmem:[#allocation5 + $0x88] sm:$0xf]
    %v159 = vld [vmem:[#allocation5 + $0x8c] sm:$0xf]
    %v160 = vld [vmem:[#allocation5 + $0x90] sm:$0xf]
    %v161 = vld [vmem:[#allocation5 + $0x94] sm:$0xf]
    %v162 = vld [vmem:[#allocation5 + $0x98] sm:$0xf]
    %v163 = vld [vmem:[#allocation5 + $0x9c] sm:$0xf]
    %v164 = vld [vmem:[#allocation5 + $0xa0] sm:$0xf]
    %v165 = vld [vmem:[#allocation5 + $0xa4] sm:$0xf]
    %v166 = vld [vmem:[#allocation5 + $0xa8] sm:$0xf]
    %v167 = vld [vmem:[#allocation5 + $0xac] sm:$0xf]
    %v168 = vld [vmem:[#allocation5 + $0xb0] sm:$0xf]
    %v169 = vld [vmem:[#allocation5 + $0xb4] sm:$0xf]
    %v170 = vld [vmem:[#allocation5 + $0xb8] sm:$0xf]
    %v171 = vld [vmem:[#allocation5 + $0xbc] sm:$0xf]
    %v172 = vld [vmem:[#allocation5 + $0xc0] sm:$0xf]
    %v173 = vld [vmem:[#allocation5 + $0xc4] sm:$0xf]
    %v174 = vld [vmem:[#allocation5 + $0xc8] sm:$0xf]
    %v175 = vld [vmem:[#allocation5 + $0xcc] sm:$0xf]
    %v176 = vld [vmem:[#allocation5 + $0xd0] sm:$0xf]
    %v177 = vld [vmem:[#allocation5 + $0xd4] sm:$0xf]
    %v178 = vld [vmem:[#allocation5 + $0xd8] sm:$0xf]
    %v179 = vld [vmem:[#allocation5 + $0xdc] sm:$0xf]
    %v180 = vld [vmem:[#allocation5 + $0xe0] sm:$0xf]
    %v181 = vld [vmem:[#allocation5 + $0xe4] sm:$0xf]
    %v182 = vld [vmem:[#allocation5 + $0xe8] sm:$0xf]
    %v183 = vld [vmem:[#allocation5 + $0xec] sm:$0xf]
    %v184 = vld [vmem:[#allocation5 + $0xf0] sm:$0xf]
    %v185 = vld [vmem:[#allocation5 + $0xf4] sm:$0xf]
    %v186 = vld [vmem:[#allocation5 + $0xf8] sm:$0xf]
    %v187 = vld [vmem:[#allocation5 + $0xfc] sm:$0xf]
    %v188 = vld [vmem:[#allocation5 + $0x100] sm:$0xf]
    %v189 = vld [vmem:[#allocation5 + $0x104] sm:$0xf]
    %v190 = vld [vmem:[#allocation5 + $0x108] sm:$0xf]
    %v191 = vld [vmem:[#allocation5 + $0x10c] sm:$0xf]
    %v192 = vld [vmem:[#allocation5 + $0x110] sm:$0xf]
    %v193 = vld [vmem:[#allocation5 + $0x114] sm:$0xf]
    %v194 = vld [vmem:[#allocation5 + $0x118] sm:$0xf]
    %v195 = vld [vmem:[#allocation5 + $0x11c] sm:$0xf]
    %v196 = vld [vmem:[#allocation5 + $0x120] sm:$0xf]
    %v197 = vld [vmem:[#allocation5 + $0x124] sm:$0xf]
    %v198 = vld [vmem:[#allocation5 + $0x128] sm:$0xf]
    %v199 = vld [vmem:[#allocation5 + $0x12c] sm:$0xf]
    %v200 = vld [vmem:[#allocation5 + $0x130] sm:$0xf]
    %v201 = vld [vmem:[#allocation5 + $0x134] sm:$0xf]
    %v202 = vld [vmem:[#allocation5 + $0x138] sm:$0xf]
    %v203 = vld [vmem:[#allocation5 + $0x13c] sm:$0xf]
    %v204 = vld [vmem:[#allocation5 + $0x140] sm:$0xf]
    %v205 = vld [vmem:[#allocation5 + $0x144] sm:$0xf]
    %v206 = vld [vmem:[#allocation5 + $0x148] sm:$0xf]
    %v207 = vld [vmem:[#allocation5 + $0x14c] sm:$0xf]
    %v208 = vld [vmem:[#allocation5 + $0x150] sm:$0xf]
    %v209 = vld [vmem:[#allocation5 + $0x154] sm:$0xf]
    %v210 = vld [vmem:[#allocation5 + $0x158] sm:$0xf]
    %v211 = vld [vmem:[#allocation5 + $0x15c] sm:$0xf]
    %v212 = vld [vmem:[#allocation5 + $0x160] sm:$0xf]
    %v213 = vld [vmem:[#allocation5 + $0x164] sm:$0xf]
    %v214 = vld [vmem:[#allocation5 + $0x168] sm:$0xf]
    %v215 = vld [vmem:[#allocation5 + $0x16c] sm:$0xf]
    %v216 = vld [vmem:[#allocation5 + $0x170] sm:$0xf]
    %v217 = vld [vmem:[#allocation5 + $0x174] sm:$0xf]
    %v218 = vld [vmem:[#allocation5 + $0x178] sm:$0xf]
    %v219 = vld [vmem:[#allocation5 + $0x17c] sm:$0xf]
    %v220 = vld [vmem:[#allocation5 + $0x180] sm:$0xf]
    %v221 = vld [vmem:[#allocation5 + $0x184] sm:$0xf]
    %v222 = vld [vmem:[#allocation5 + $0x188] sm:$0xf]
    %v223 = vld [vmem:[#allocation5 + $0x18c] sm:$0xf]
    %v224 = vld [vmem:[#allocation5 + $0x190] sm:$0xf]
    %v225 = vld [vmem:[#allocation5 + $0x194] sm:$0xf]
    %v226 = vld [vmem:[#allocation5 + $0x198] sm:$0xf]
    %v227 = vld [vmem:[#allocation5 + $0x19c] sm:$0xf]
    %v228 = vld [vmem:[#allocation5 + $0x1a0] sm:$0xf]
    %v229 = vld [vmem:[#allocation5 + $0x1a4] sm:$0xf]
    %v230 = vld [vmem:[#allocation5 + $0x1a8] sm:$0xf]
    %v231 = vld [vmem:[#allocation5 + $0x1ac] sm:$0xf]
    %v232 = vld [vmem:[#allocation5 + $0x1b0] sm:$0xf]
    %v233 = vld [vmem:[#allocation5 + $0x1b4] sm:$0xf]
    %v234 = vld [vmem:[#allocation5 + $0x1b8] sm:$0xf]
    %v235 = vld [vmem:[#allocation5 + $0x1bc] sm:$0xf]
    %v236 = vld [vmem:[#allocation5 + $0x1c0] sm:$0xf]
    %v237 = vld [vmem:[#allocation5 + $0x1c4] sm:$0xf]
    %v238 = vld [vmem:[#allocation5 + $0x1c8] sm:$0xf]
    %v239 = vld [vmem:[#allocation5 + $0x1cc] sm:$0xf]
    %v240 = vld [vmem:[#allocation5 + $0x1d0] sm:$0xf]
    %v241 = vld [vmem:[#allocation5 + $0x1d4] sm:$0xf]
    %v242 = vld [vmem:[#allocation5 + $0x1d8] sm:$0xf]
    %v243 = vld [vmem:[#allocation5 + $0x1dc] sm:$0xf]
    %v244 = vld [vmem:[#allocation5 + $0x1e0] sm:$0xf]
    %v245 = vld [vmem:[#allocation5 + $0x1e4] sm:$0xf]
    %v246 = vld [vmem:[#allocation5 + $0x1e8] sm:$0xf]
    %v247 = vld [vmem:[#allocation5 + $0x1ec] sm:$0xf]
    %v248 = vld [vmem:[#allocation5 + $0x1f0] sm:$0xf]
    %v249 = vld [vmem:[#allocation5 + $0x1f4] sm:$0xf]
    %v250 = vld [vmem:[#allocation5 + $0x1f8] sm:$0xf]
    %v251 = vld [vmem:[#allocation5 + $0x1fc] sm:$0xf]
    %v252 = vld [vmem:[%s2] sm:$0x1]
    %v254 = vlaneseq
    %v255 = vshrl.u32 %v254, 7
    %v256 = vsub.s32 0, %v255
    %v257 = vrot.slane %v252, %v256
    %v263 = vunpack.c.l.b16 %v120
    %v264 = vunpack.c.h.b16 %v120
    %v265 = vunpack.c.l.b16 %v121
    %v266 = vunpack.c.h.b16 %v121
    %v267 = vunpack.c.l.b16 %v122
    %v268 = vunpack.c.h.b16 %v122
    %v269 = vunpack.c.l.b16 %v123
    %v270 = vunpack.c.h.b16 %v123
    %v271 = vpack.c.b16 %v263, %v263
    %v272 = vpack.c.b16 %v264, %v264
    %v273 = vpack.c.b16 %v265, %v265
    %v274 = vpack.c.b16 %v266, %v266
    %v275 = vpack.c.b16 %v267, %v267
    %v276 = vpack.c.b16 %v268, %v268
    %v277 = vpack.c.b16 %v269, %v269
    %v278 = vpack.c.b16 %v270, %v270
    %v415 = vunpack.c.l.b16 %v124
    %v416 = vunpack.c.l.b16 %v125
    %v417 = vunpack.c.l.b16 %v126
    %v418 = vunpack.c.l.b16 %v127
    %v419 = vunpack.c.l.b16 %v128
    %v420 = vunpack.c.l.b16 %v129
    %v421 = vunpack.c.l.b16 %v130
    %v422 = vunpack.c.l.b16 %v131
    %v423 = vunpack.c.l.b16 %v132
    %v424 = vunpack.c.l.b16 %v133
    %v425 = vunpack.c.l.b16 %v134
    %v426 = vunpack.c.l.b16 %v135
    %v427 = vunpack.c.l.b16 %v136
    %v428 = vunpack.c.l.b16 %v137
    %v429 = vunpack.c.l.b16 %v138
    %v430 = vunpack.c.l.b16 %v139
    %v431 = vunpack.c.l.b16 %v140
    %v432 = vunpack.c.l.b16 %v141
    %v433 = vunpack.c.l.b16 %v142
    %v434 = vunpack.c.l.b16 %v143
    %v435 = vunpack.c.l.b16 %v144
    %v436 = vunpack.c.l.b16 %v145
    %v437 = vunpack.c.l.b16 %v146
    %v438 = vunpack.c.l.b16 %v147
    %v439 = vunpack.c.l.b16 %v148
    %v440 = vunpack.c.l.b16 %v149
    %v441 = vunpack.c.l.b16 %v150
    %v442 = vunpack.c.l.b16 %v151
    %v443 = vunpack.c.l.b16 %v152
    %v444 = vunpack.c.l.b16 %v153
    %v445 = vunpack.c.l.b16 %v154
    %v446 = vunpack.c.l.b16 %v155
    %v447 = vunpack.c.l.b16 %v156
    %v448 = vunpack.c.l.b16 %v157
    %v449 = vunpack.c.l.b16 %v158
    %v450 = vunpack.c.l.b16 %v159
    %v451 = vunpack.c.l.b16 %v160
    %v452 = vunpack.c.l.b16 %v161
    %v453 = vunpack.c.l.b16 %v162
    %v454 = vunpack.c.l.b16 %v163
    %v455 = vunpack.c.l.b16 %v164
    %v456 = vunpack.c.l.b16 %v165
    %v457 = vunpack.c.l.b16 %v166
    %v458 = vunpack.c.l.b16 %v167
    %v459 = vunpack.c.l.b16 %v168
    %v460 = vunpack.c.l.b16 %v169
    %v461 = vunpack.c.l.b16 %v170
    %v462 = vunpack.c.l.b16 %v171
    %v463 = vunpack.c.l.b16 %v172
    %v464 = vunpack.c.l.b16 %v173
    %v465 = vunpack.c.l.b16 %v174
    %v466 = vunpack.c.l.b16 %v175
    %v467 = vunpack.c.l.b16 %v176
    %v468 = vunpack.c.l.b16 %v177
    %v469 = vunpack.c.l.b16 %v178
    %v470 = vunpack.c.l.b16 %v179
    %v471 = vunpack.c.l.b16 %v180
    %v472 = vunpack.c.l.b16 %v181
    %v473 = vunpack.c.l.b16 %v182
    %v474 = vunpack.c.l.b16 %v183
    %v475 = vunpack.c.l.b16 %v184
    %v476 = vunpack.c.l.b16 %v185
    %v477 = vunpack.c.l.b16 %v186
    %v478 = vunpack.c.l.b16 %v187
    %v479 = vunpack.c.l.b16 %v188
    %v480 = vunpack.c.l.b16 %v189
    %v481 = vunpack.c.l.b16 %v190
    %v482 = vunpack.c.l.b16 %v191
    %v483 = vunpack.c.l.b16 %v192
    %v484 = vunpack.c.l.b16 %v193
    %v485 = vunpack.c.l.b16 %v194
    %v486 = vunpack.c.l.b16 %v195
    %v487 = vunpack.c.l.b16 %v196
    %v488 = vunpack.c.l.b16 %v197
    %v489 = vunpack.c.l.b16 %v198
    %v490 = vunpack.c.l.b16 %v199
    %v491 = vunpack.c.l.b16 %v200
    %v492 = vunpack.c.l.b16 %v201
    %v493 = vunpack.c.l.b16 %v202
    %v494 = vunpack.c.l.b16 %v203
    %v495 = vunpack.c.l.b16 %v204
    %v496 = vunpack.c.l.b16 %v205
    %v497 = vunpack.c.l.b16 %v206
    %v498 = vunpack.c.l.b16 %v207
    %v499 = vunpack.c.l.b16 %v208
    %v500 = vunpack.c.l.b16 %v209
    %v501 = vunpack.c.l.b16 %v210
    %v502 = vunpack.c.l.b16 %v211
    %v503 = vunpack.c.l.b16 %v212
    %v504 = vunpack.c.l.b16 %v213
    %v505 = vunpack.c.l.b16 %v214
    %v506 = vunpack.c.l.b16 %v215
    %v507 = vunpack.c.l.b16 %v216
    %v508 = vunpack.c.l.b16 %v217
    %v509 = vunpack.c.l.b16 %v218
    %v510 = vunpack.c.l.b16 %v219
    %v511 = vunpack.c.l.b16 %v220
    %v512 = vunpack.c.l.b16 %v221
    %v513 = vunpack.c.l.b16 %v222
    %v514 = vunpack.c.l.b16 %v223
    %v515 = vunpack.c.l.b16 %v224
    %v516 = vunpack.c.l.b16 %v225
    %v517 = vunpack.c.l.b16 %v226
    %v518 = vunpack.c.l.b16 %v227
    %v519 = vunpack.c.l.b16 %v228
    %v520 = vunpack.c.l.b16 %v229
    %v521 = vunpack.c.l.b16 %v230
    %v522 = vunpack.c.l.b16 %v231
    %v523 = vunpack.c.l.b16 %v232
    %v524 = vunpack.c.l.b16 %v233
    %v525 = vunpack.c.l.b16 %v234
    %v526 = vunpack.c.l.b16 %v235
    %v527 = vunpack.c.l.b16 %v236
    %v528 = vunpack.c.l.b16 %v237
    %v529 = vunpack.c.l.b16 %v238
    %v530 = vunpack.c.l.b16 %v239
    %v531 = vunpack.c.l.b16 %v240
    %v532 = vunpack.c.l.b16 %v241
    %v533 = vunpack.c.l.b16 %v242
    %v534 = vunpack.c.l.b16 %v243
    %v535 = vunpack.c.l.b16 %v244
    %v536 = vunpack.c.l.b16 %v245
    %v537 = vunpack.c.l.b16 %v246
    %v538 = vunpack.c.l.b16 %v247
    %v539 = vunpack.c.l.b16 %v248
    %v540 = vunpack.c.l.b16 %v249
    %v541 = vunpack.c.l.b16 %v250
    %v542 = vunpack.c.l.b16 %v251
    %v543 = vpack.c.b16 %v416, %v415
    %v544 = vpack.c.b16 %v418, %v417
    %v545 = vpack.c.b16 %v420, %v419
    %v546 = vpack.c.b16 %v422, %v421
    %v547 = vpack.c.b16 %v424, %v423
    %v548 = vpack.c.b16 %v426, %v425
    %v549 = vpack.c.b16 %v428, %v427
    %v550 = vpack.c.b16 %v430, %v429
    %v551 = vpack.c.b16 %v432, %v431
    %v552 = vpack.c.b16 %v434, %v433
    %v553 = vpack.c.b16 %v436, %v435
    %v554 = vpack.c.b16 %v438, %v437
    %v555 = vpack.c.b16 %v440, %v439
    %v556 = vpack.c.b16 %v442, %v441
    %v557 = vpack.c.b16 %v444, %v443
    %v558 = vpack.c.b16 %v446, %v445
    %v559 = vpack.c.b16 %v448, %v447
    %v560 = vpack.c.b16 %v450, %v449
    %v561 = vpack.c.b16 %v452, %v451
    %v562 = vpack.c.b16 %v454, %v453
    %v563 = vpack.c.b16 %v456, %v455
    %v564 = vpack.c.b16 %v458, %v457
    %v565 = vpack.c.b16 %v460, %v459
    %v566 = vpack.c.b16 %v462, %v461
    %v567 = vpack.c.b16 %v464, %v463
    %v568 = vpack.c.b16 %v466, %v465
    %v569 = vpack.c.b16 %v468, %v467
    %v570 = vpack.c.b16 %v470, %v469
    %v571 = vpack.c.b16 %v472, %v471
    %v572 = vpack.c.b16 %v474, %v473
    %v573 = vpack.c.b16 %v476, %v475
    %v574 = vpack.c.b16 %v478, %v477
    %v575 = vpack.c.b16 %v480, %v479
    %v576 = vpack.c.b16 %v482, %v481
    %v577 = vpack.c.b16 %v484, %v483
    %v578 = vpack.c.b16 %v486, %v485
    %v579 = vpack.c.b16 %v488, %v487
    %v580 = vpack.c.b16 %v490, %v489
    %v581 = vpack.c.b16 %v492, %v491
    %v582 = vpack.c.b16 %v494, %v493
    %v583 = vpack.c.b16 %v496, %v495
    %v584 = vpack.c.b16 %v498, %v497
    %v585 = vpack.c.b16 %v500, %v499
    %v586 = vpack.c.b16 %v502, %v501
    %v587 = vpack.c.b16 %v504, %v503
    %v588 = vpack.c.b16 %v506, %v505
    %v589 = vpack.c.b16 %v508, %v507
    %v590 = vpack.c.b16 %v510, %v509
    %v591 = vpack.c.b16 %v512, %v511
    %v592 = vpack.c.b16 %v514, %v513
    %v593 = vpack.c.b16 %v516, %v515
    %v594 = vpack.c.b16 %v518, %v517
    %v595 = vpack.c.b16 %v520, %v519
    %v596 = vpack.c.b16 %v522, %v521
    %v597 = vpack.c.b16 %v524, %v523
    %v598 = vpack.c.b16 %v526, %v525
    %v599 = vpack.c.b16 %v528, %v527
    %v600 = vpack.c.b16 %v530, %v529
    %v601 = vpack.c.b16 %v532, %v531
    %v602 = vpack.c.b16 %v534, %v533
    %v603 = vpack.c.b16 %v536, %v535
    %v604 = vpack.c.b16 %v538, %v537
    %v605 = vpack.c.b16 %v540, %v539
    %v606 = vpack.c.b16 %v542, %v541
    %671 = vmatprep.subr.bf16.mxu0 0
    %672 = vmatpush1.bf16.msra.mxu0 %v543
    %673 = vmatprep.subr.bf16.mxu0 0
    %674 = vmatpush1.bf16.msra.mxu0 %v544
    %675 = vmatprep.subr.bf16.mxu0 0
    %676 = vmatpush1.bf16.msra.mxu0 %v545
    %677 = vmatprep.subr.bf16.mxu0 0
    %678 = vmatpush1.bf16.msra.mxu0 %v546
    %679 = vmatprep.subr.bf16.mxu0 0
    %680 = vmatpush1.bf16.msra.mxu0 %v547
    %681 = vmatprep.subr.bf16.mxu0 0
    %682 = vmatpush1.bf16.msra.mxu0 %v548
    %683 = vmatprep.subr.bf16.mxu0 0
    %684 = vmatpush1.bf16.msra.mxu0 %v549
    %685 = vmatprep.subr.bf16.mxu0 0
    %686 = vmatpush1.bf16.msra.mxu0 %v550
    %687 = vmatprep.subr.bf16.mxu0 0
    %688 = vmatpush1.bf16.msra.mxu0 %v551
    %689 = vmatprep.subr.bf16.mxu0 0
    %690 = vmatpush1.bf16.msra.mxu0 %v552
    %691 = vmatprep.subr.bf16.mxu0 0
    %692 = vmatpush1.bf16.msra.mxu0 %v553
    %693 = vmatprep.subr.bf16.mxu0 0
    %694 = vmatpush1.bf16.msra.mxu0 %v554
    %695 = vmatprep.subr.bf16.mxu0 0
    %696 = vmatpush1.bf16.msra.mxu0 %v555
    %697 = vmatprep.subr.bf16.mxu0 0
    %698 = vmatpush1.bf16.msra.mxu0 %v556
    %699 = vmatprep.subr.bf16.mxu0 0
    %700 = vmatpush1.bf16.msra.mxu0 %v557
    %701 = vmatprep.subr.bf16.mxu0 0
    %702 = vmatpush1.bf16.msra.mxu0 %v558
    %703 = vmatprep.mubr.bf16.mxu0 %v272
    %704 = vmatmul.mubr.bf16.gmra.mrb[0].mxu0 %v271
    %v705 = vpop.f32.mrb[0].mxu0
    %v706 = vadd.f32 %v257, %v705
    %v707 = vpop.f32.mrb[0].mxu0
    %v708 = vpop.f32.mrb[0].mxu0
    %v709 = vpop.f32.mrb[0].mxu0
    %710 = vdwg.mxu0
    %711 = vmatprep.subr.bf16.mxu0 0
    %712 = vmatpush1.bf16.msra.mxu0 %v559
    %713 = vmatprep.subr.bf16.mxu0 0
    %714 = vmatpush1.bf16.msra.mxu0 %v560
    %715 = vmatprep.subr.bf16.mxu0 0
    %716 = vmatpush1.bf16.msra.mxu0 %v561
    %717 = vmatprep.subr.bf16.mxu0 0
    %718 = vmatpush1.bf16.msra.mxu0 %v562
    %719 = vmatprep.subr.bf16.mxu0 0
    %720 = vmatpush1.bf16.msra.mxu0 %v563
    %721 = vmatprep.subr.bf16.mxu0 0
    %722 = vmatpush1.bf16.msra.mxu0 %v564
    %723 = vmatprep.subr.bf16.mxu0 0
    %724 = vmatpush1.bf16.msra.mxu0 %v565
    %725 = vmatprep.subr.bf16.mxu0 0
    %726 = vmatpush1.bf16.msra.mxu0 %v566
    %727 = vmatprep.subr.bf16.mxu0 0
    %728 = vmatpush1.bf16.msra.mxu0 %v567
    %729 = vmatprep.subr.bf16.mxu0 0
    %730 = vmatpush1.bf16.msra.mxu0 %v568
    %731 = vmatprep.subr.bf16.mxu0 0
    %732 = vmatpush1.bf16.msra.mxu0 %v569
    %733 = vmatprep.subr.bf16.mxu0 0
    %734 = vmatpush1.bf16.msra.mxu0 %v570
    %735 = vmatprep.subr.bf16.mxu0 0
    %736 = vmatpush1.bf16.msra.mxu0 %v571
    %737 = vmatprep.subr.bf16.mxu0 0
    %738 = vmatpush1.bf16.msra.mxu0 %v572
    %739 = vmatprep.subr.bf16.mxu0 0
    %740 = vmatpush1.bf16.msra.mxu0 %v573
    %741 = vmatprep.subr.bf16.mxu0 0
    %742 = vmatpush1.bf16.msra.mxu0 %v574
    %743 = vmatprep.mubr.bf16.mxu0 %v274
    %744 = vmatmul.mubr.bf16.gmra.mrb[0].mxu0 %v273
    %v745 = vpop.f32.mrb[0].mxu0
    %v746 = vadd.f32 %v706, %v745
    %v747 = vpop.f32.mrb[0].mxu0
    %v748 = vpop.f32.mrb[0].mxu0
    %v749 = vpop.f32.mrb[0].mxu0
    %750 = vdwg.mxu0
    %751 = vmatprep.subr.bf16.mxu0 0
    %752 = vmatpush1.bf16.msra.mxu0 %v575
    %753 = vmatprep.subr.bf16.mxu0 0
    %754 = vmatpush1.bf16.msra.mxu0 %v576
    %755 = vmatprep.subr.bf16.mxu0 0
    %756 = vmatpush1.bf16.msra.mxu0 %v577
    %757 = vmatprep.subr.bf16.mxu0 0
    %758 = vmatpush1.bf16.msra.mxu0 %v578
    %759 = vmatprep.subr.bf16.mxu0 0
    %760 = vmatpush1.bf16.msra.mxu0 %v579
    %761 = vmatprep.subr.bf16.mxu0 0
    %762 = vmatpush1.bf16.msra.mxu0 %v580
    %763 = vmatprep.subr.bf16.mxu0 0
    %764 = vmatpush1.bf16.msra.mxu0 %v581
    %765 = vmatprep.subr.bf16.mxu0 0
    %766 = vmatpush1.bf16.msra.mxu0 %v582
    %767 = vmatprep.subr.bf16.mxu0 0
    %768 = vmatpush1.bf16.msra.mxu0 %v583
    %769 = vmatprep.subr.bf16.mxu0 0
    %770 = vmatpush1.bf16.msra.mxu0 %v584
    %771 = vmatprep.subr.bf16.mxu0 0
    %772 = vmatpush1.bf16.msra.mxu0 %v585
    %773 = vmatprep.subr.bf16.mxu0 0
    %774 = vmatpush1.bf16.msra.mxu0 %v586
    %775 = vmatprep.subr.bf16.mxu0 0
    %776 = vmatpush1.bf16.msra.mxu0 %v587
    %777 = vmatprep.subr.bf16.mxu0 0
    %778 = vmatpush1.bf16.msra.mxu0 %v588
    %779 = vmatprep.subr.bf16.mxu0 0
    %780 = vmatpush1.bf16.msra.mxu0 %v589
    %781 = vmatprep.subr.bf16.mxu0 0
    %782 = vmatpush1.bf16.msra.mxu0 %v590
    %783 = vmatprep.mubr.bf16.mxu0 %v276
    %784 = vmatmul.mubr.bf16.gmra.mrb[0].mxu0 %v275
    %v785 = vpop.f32.mrb[0].mxu0
    %v786 = vadd.f32 %v746, %v785
    %v787 = vpop.f32.mrb[0].mxu0
    %v788 = vpop.f32.mrb[0].mxu0
    %v789 = vpop.f32.mrb[0].mxu0
    %790 = vdwg.mxu0
    %791 = vmatprep.subr.bf16.mxu0 0
    %792 = vmatpush1.bf16.msra.mxu0 %v591
    %793 = vmatprep.subr.bf16.mxu0 0
    %794 = vmatpush1.bf16.msra.mxu0 %v592
    %795 = vmatprep.subr.bf16.mxu0 0
    %796 = vmatpush1.bf16.msra.mxu0 %v593
    %797 = vmatprep.subr.bf16.mxu0 0
    %798 = vmatpush1.bf16.msra.mxu0 %v594
    %799 = vmatprep.subr.bf16.mxu0 0
    %800 = vmatpush1.bf16.msra.mxu0 %v595
    %801 = vmatprep.subr.bf16.mxu0 0
    %802 = vmatpush1.bf16.msra.mxu0 %v596
    %803 = vmatprep.subr.bf16.mxu0 0
    %804 = vmatpush1.bf16.msra.mxu0 %v597
    %805 = vmatprep.subr.bf16.mxu0 0
    %806 = vmatpush1.bf16.msra.mxu0 %v598
    %807 = vmatprep.subr.bf16.mxu0 0
    %808 = vmatpush1.bf16.msra.mxu0 %v599
    %809 = vmatprep.subr.bf16.mxu0 0
    %810 = vmatpush1.bf16.msra.mxu0 %v600
    %811 = vmatprep.subr.bf16.mxu0 0
    %812 = vmatpush1.bf16.msra.mxu0 %v601
    %813 = vmatprep.subr.bf16.mxu0 0
    %814 = vmatpush1.bf16.msra.mxu0 %v602
    %815 = vmatprep.subr.bf16.mxu0 0
    %816 = vmatpush1.bf16.msra.mxu0 %v603
    %817 = vmatprep.subr.bf16.mxu0 0
    %818 = vmatpush1.bf16.msra.mxu0 %v604
    %819 = vmatprep.subr.bf16.mxu0 0
    %820 = vmatpush1.bf16.msra.mxu0 %v605
    %821 = vmatprep.subr.bf16.mxu0 0
    %822 = vmatpush1.bf16.msra.mxu0 %v606
    %823 = vmatprep.mubr.bf16.mxu0 %v278
    %824 = vmatmul.mubr.bf16.gmra.mrb[0].mxu0 %v277
    %v825 = vpop.f32.mrb[0].mxu0
    %v826 = vadd.f32 %v786, %v825
    %v827 = vpop.f32.mrb[0].mxu0
    %v828 = vpop.f32.mrb[0].mxu0
    %v829 = vpop.f32.mrb[0].mxu0
    %830 = vdwg.mxu0
    %v831 = vmax.f32 %v826, 0.0
    %v832 = vpack.c.bf16 %v831, %v831
    %v833 = vld [vmem:[#allocation7] sm:$0xf]
    %v834 = vld [vmem:[#allocation7 + $0x4] sm:$0xf]
    %v835 = vld [vmem:[#allocation7 + $0x8] sm:$0xf]
    %v836 = vld [vmem:[#allocation7 + $0xc] sm:$0xf]
    %v837 = vld [vmem:[#allocation7 + $0x10] sm:$0xf]
    %v838 = vld [vmem:[#allocation7 + $0x14] sm:$0xf]
    %v839 = vld [vmem:[#allocation7 + $0x18] sm:$0xf]
    %v840 = vld [vmem:[#allocation7 + $0x1c] sm:$0xf]
    %v841 = vld [vmem:[#allocation7 + $0x20] sm:$0xf]
    %v842 = vld [vmem:[#allocation7 + $0x24] sm:$0xf]
    %v843 = vld [vmem:[#allocation7 + $0x28] sm:$0xf]
    %v844 = vld [vmem:[#allocation7 + $0x2c] sm:$0xf]
    %v845 = vld [vmem:[#allocation7 + $0x30] sm:$0xf]
    %v846 = vld [vmem:[#allocation7 + $0x34] sm:$0xf]
    %v847 = vld [vmem:[#allocation7 + $0x38] sm:$0xf]
    %v848 = vld [vmem:[#allocation7 + $0x3c] sm:$0xf]
    %v849 = vld [vmem:[%s4] sm:$0x1]
    %v851 = vlaneseq
    %v852 = vshrl.u32 %v851, 7
    %v853 = vsub.s32 0, %v852
    %v854 = vrot.slane %v849, %v853
    %v872 = vunpack.c.l.b16 %v833
    %v873 = vunpack.c.l.b16 %v834
    %v874 = vunpack.c.l.b16 %v835
    %v875 = vunpack.c.l.b16 %v836
    %v876 = vunpack.c.l.b16 %v837
    %v877 = vunpack.c.l.b16 %v838
    %v878 = vunpack.c.l.b16 %v839
    %v879 = vunpack.c.l.b16 %v840
    %v880 = vunpack.c.l.b16 %v841
    %v881 = vunpack.c.l.b16 %v842
    %v882 = vunpack.c.l.b16 %v843
    %v883 = vunpack.c.l.b16 %v844
    %v884 = vunpack.c.l.b16 %v845
    %v885 = vunpack.c.l.b16 %v846
    %v886 = vunpack.c.l.b16 %v847
    %v887 = vunpack.c.l.b16 %v848
    %v888 = vpack.c.b16 %v873, %v872
    %v889 = vpack.c.b16 %v875, %v874
    %v890 = vpack.c.b16 %v877, %v876
    %v891 = vpack.c.b16 %v879, %v878
    %v892 = vpack.c.b16 %v881, %v880
    %v893 = vpack.c.b16 %v883, %v882
    %v894 = vpack.c.b16 %v885, %v884
    %v895 = vpack.c.b16 %v887, %v886
    %904 = vmatprep.subr.bf16.mxu0 0
    %905 = vmatpush1.bf16.msra.mxu0 %v888
    %906 = vmatprep.subr.bf16.mxu0 0
    %907 = vmatpush1.bf16.msra.mxu0 %v889
    %908 = vmatprep.subr.bf16.mxu0 0
    %909 = vmatpush1.bf16.msra.mxu0 %v890
    %910 = vmatprep.subr.bf16.mxu0 0
    %911 = vmatpush1.bf16.msra.mxu0 %v891
    %912 = vmatprep.subr.bf16.mxu0 0
    %913 = vmatpush1.bf16.msra.mxu0 %v892
    %914 = vmatprep.subr.bf16.mxu0 0
    %915 = vmatpush1.bf16.msra.mxu0 %v893
    %916 = vmatprep.subr.bf16.mxu0 0
    %917 = vmatpush1.bf16.msra.mxu0 %v894
    %918 = vmatprep.subr.bf16.mxu0 0
    %919 = vmatpush1.bf16.msra.mxu0 %v895
    %920 = vmatprep.subr.bf16.mxu0 0
    %921 = vmatpush1.bf16.msra.mxu0 0
    %922 = vmatprep.subr.bf16.mxu0 0
    %923 = vmatpush1.bf16.msra.mxu0 0
    %924 = vmatprep.subr.bf16.mxu0 0
    %925 = vmatpush1.bf16.msra.mxu0 0
    %926 = vmatprep.subr.bf16.mxu0 0
    %927 = vmatpush1.bf16.msra.mxu0 0
    %928 = vmatprep.subr.bf16.mxu0 0
    %929 = vmatpush1.bf16.msra.mxu0 0
    %930 = vmatprep.subr.bf16.mxu0 0
    %931 = vmatpush1.bf16.msra.mxu0 0
    %932 = vmatprep.subr.bf16.mxu0 0
    %933 = vmatpush1.bf16.msra.mxu0 0
    %934 = vmatprep.subr.bf16.mxu0 0
    %935 = vmatpush1.bf16.msra.mxu0 0
    %936 = vmatprep.mubr.bf16.mxu0 0
    %937 = vmatmul.mubr.bf16.gmra.mrb[0].mxu0 %v832
    %v938 = vpop.f32.mrb[0].mxu0
    %v939 = vadd.f32 %v854, %v938
    %v940 = vpop.f32.mrb[0].mxu0
    %v941 = vpop.f32.mrb[0].mxu0
    %v942 = vpop.f32.mrb[0].mxu0
    %943 = vdwg.mxu0
    %v944 = vmax.f32 %v939, 0.0
    %v945 = vpack.c.bf16 %v944, %v944
    %v946 = vld [vmem:[#allocation8] sm:$0xf]
    %v947 = vld [vmem:[#allocation8 + $0x4] sm:$0xf]
    %v948 = vld [vmem:[#allocation8 + $0x8] sm:$0xf]
    %v949 = vld [vmem:[#allocation8 + $0xc] sm:$0xf]
    %v950 = vld [vmem:[#allocation8 + $0x10] sm:$0xf]
    %v951 = vld [vmem:[#allocation8 + $0x14] sm:$0xf]
    %v952 = vld [vmem:[#allocation8 + $0x18] sm:$0xf]
    %v953 = vld [vmem:[#allocation8 + $0x1c] sm:$0xf]
    %v954 = vld [vmem:[#allocation8 + $0x20] sm:$0xf]
    %v955 = vld [vmem:[#allocation8 + $0x24] sm:$0xf]
    %v956 = vld [vmem:[#allocation8 + $0x28] sm:$0xf]
    %v957 = vld [vmem:[#allocation8 + $0x2c] sm:$0xf]
    %v958 = vld [vmem:[#allocation8 + $0x30] sm:$0xf]
    %v959 = vld [vmem:[#allocation8 + $0x34] sm:$0xf]
    %v960 = vld [vmem:[#allocation8 + $0x38] sm:$0xf]
    %v961 = vld [vmem:[#allocation8 + $0x3c] sm:$0xf]
    %v962 = vld [vmem:[%s6] sm:$0x1]
    %v964 = vlaneseq
    %v965 = vshrl.u32 %v964, 7
    %v966 = vsub.s32 0, %v965
    %v967 = vrot.slane %v962, %v966
    %v985 = vunpack.c.l.b16 %v946
    %v986 = vunpack.c.l.b16 %v947
    %v987 = vunpack.c.l.b16 %v948
    %v988 = vunpack.c.l.b16 %v949
    %v989 = vunpack.c.l.b16 %v950
    %v990 = vunpack.c.l.b16 %v951
    %v991 = vunpack.c.l.b16 %v952
    %v992 = vunpack.c.l.b16 %v953
    %v993 = vunpack.c.l.b16 %v954
    %v994 = vunpack.c.l.b16 %v955
    %v995 = vunpack.c.l.b16 %v956
    %v996 = vunpack.c.l.b16 %v957
    %v997 = vunpack.c.l.b16 %v958
    %v998 = vunpack.c.l.b16 %v959
    %v999 = vunpack.c.l.b16 %v960
    %v1000 = vunpack.c.l.b16 %v961
    %v1001 = vpack.c.b16 %v986, %v985
    %v1002 = vpack.c.b16 %v988, %v987
    %v1003 = vpack.c.b16 %v990, %v989
    %v1004 = vpack.c.b16 %v992, %v991
    %v1005 = vpack.c.b16 %v994, %v993
    %v1006 = vpack.c.b16 %v996, %v995
    %v1007 = vpack.c.b16 %v998, %v997
    %v1008 = vpack.c.b16 %v1000, %v999
    %1017 = vmatprep.subr.bf16.mxu0 0
    %1018 = vmatpush1.bf16.msra.mxu0 %v1001
    %1019 = vmatprep.subr.bf16.mxu0 0
    %1020 = vmatpush1.bf16.msra.mxu0 %v1002
    %1021 = vmatprep.subr.bf16.mxu0 0
    %1022 = vmatpush1.bf16.msra.mxu0 %v1003
    %1023 = vmatprep.subr.bf16.mxu0 0
    %1024 = vmatpush1.bf16.msra.mxu0 %v1004
    %1025 = vmatprep.subr.bf16.mxu0 0
    %1026 = vmatpush1.bf16.msra.mxu0 %v1005
    %1027 = vmatprep.subr.bf16.mxu0 0
    %1028 = vmatpush1.bf16.msra.mxu0 %v1006
    %1029 = vmatprep.subr.bf16.mxu0 0
    %1030 = vmatpush1.bf16.msra.mxu0 %v1007
    %1031 = vmatprep.subr.bf16.mxu0 0
    %1032 = vmatpush1.bf16.msra.mxu0 %v1008
    %1033 = vmatprep.subr.bf16.mxu0 0
    %1034 = vmatpush1.bf16.msra.mxu0 0
    %1035 = vmatprep.subr.bf16.mxu0 0
    %1036 = vmatpush1.bf16.msra.mxu0 0
    %1037 = vmatprep.subr.bf16.mxu0 0
    %1038 = vmatpush1.bf16.msra.mxu0 0
    %1039 = vmatprep.subr.bf16.mxu0 0
    %1040 = vmatpush1.bf16.msra.mxu0 0
    %1041 = vmatprep.subr.bf16.mxu0 0
    %1042 = vmatpush1.bf16.msra.mxu0 0
    %1043 = vmatprep.subr.bf16.mxu0 0
    %1044 = vmatpush1.bf16.msra.mxu0 0
    %1045 = vmatprep.subr.bf16.mxu0 0
    %1046 = vmatpush1.bf16.msra.mxu0 0
    %1047 = vmatprep.subr.bf16.mxu0 0
    %1048 = vmatpush1.bf16.msra.mxu0 0
    %1049 = vmatprep.mubr.bf16.mxu0 0
    %1050 = vmatmul.mubr.bf16.gmra.mrb[0].mxu0 %v945
    %v1051 = vpop.f32.mrb[0].mxu0
    %v1052 = vadd.f32 %v967, %v1051
    %v1053 = vpop.f32.mrb[0].mxu0
    %v1054 = vpop.f32.mrb[0].mxu0
    %v1055 = vpop.f32.mrb[0].mxu0
    %1056 = vdwg.mxu0
    %v1057 = vmax.f32 %v1052, 0.0
    %v1058 = vpack.c.bf16 %v1057, %v1057
    %v1059 = vld [vmem:[#allocation10] sm:$0xf]
    %v1060 = vld [vmem:[#allocation10 + $0x4] sm:$0xf]
    %v1061 = vld [vmem:[#allocation10 + $0x8] sm:$0xf]
    %v1062 = vld [vmem:[#allocation10 + $0xc] sm:$0xf]
    %v1063 = vld [vmem:[#allocation10 + $0x10] sm:$0xf]
    %v1064 = vld [vmem:[#allocation10 + $0x14] sm:$0xf]
    %v1065 = vld [vmem:[#allocation10 + $0x18] sm:$0xf]
    %v1066 = vld [vmem:[#allocation10 + $0x1c] sm:$0xf]
    %v1067 = vld [vmem:[#allocation10 + $0x20] sm:$0xf]
    %v1068 = vld [vmem:[#allocation10 + $0x24] sm:$0xf]
    %v1069 = vld [vmem:[#allocation10 + $0x28] sm:$0xf]
    %v1070 = vld [vmem:[#allocation10 + $0x2c] sm:$0xf]
    %v1071 = vld [vmem:[#allocation10 + $0x30] sm:$0xf]
    %v1072 = vld [vmem:[#allocation10 + $0x34] sm:$0xf]
    %v1073 = vld [vmem:[#allocation10 + $0x38] sm:$0xf]
    %v1074 = vld [vmem:[#allocation10 + $0x3c] sm:$0xf]
    %v1075 = vld [vmem:[%s8] sm:$0x1]
    %v1077 = vlaneseq
    %v1078 = vshrl.u32 %v1077, 7
    %v1079 = vsub.s32 0, %v1078
    %v1080 = vrot.slane %v1075, %v1079
    %v1098 = vunpack.c.l.b16 %v1059
    %v1099 = vunpack.c.l.b16 %v1060
    %v1100 = vunpack.c.l.b16 %v1061
    %v1101 = vunpack.c.l.b16 %v1062
    %v1102 = vunpack.c.l.b16 %v1063
    %v1103 = vunpack.c.l.b16 %v1064
    %v1104 = vunpack.c.l.b16 %v1065
    %v1105 = vunpack.c.l.b16 %v1066
    %v1106 = vunpack.c.l.b16 %v1067
    %v1107 = vunpack.c.l.b16 %v1068
    %v1108 = vunpack.c.l.b16 %v1069
    %v1109 = vunpack.c.l.b16 %v1070
    %v1110 = vunpack.c.l.b16 %v1071
    %v1111 = vunpack.c.l.b16 %v1072
    %v1112 = vunpack.c.l.b16 %v1073
    %v1113 = vunpack.c.l.b16 %v1074
    %v1114 = vpack.c.b16 %v1099, %v1098
    %v1115 = vpack.c.b16 %v1101, %v1100
    %v1116 = vpack.c.b16 %v1103, %v1102
    %v1117 = vpack.c.b16 %v1105, %v1104
    %v1118 = vpack.c.b16 %v1107, %v1106
    %v1119 = vpack.c.b16 %v1109, %v1108
    %v1120 = vpack.c.b16 %v1111, %v1110
    %v1121 = vpack.c.b16 %v1113, %v1112
    %1130 = vmatprep.subr.bf16.mxu0 0
    %1131 = vmatpush1.bf16.msra.mxu0 %v1114
    %1132 = vmatprep.subr.bf16.mxu0 0
    %1133 = vmatpush1.bf16.msra.mxu0 %v1115
    %1134 = vmatprep.subr.bf16.mxu0 0
    %1135 = vmatpush1.bf16.msra.mxu0 %v1116
    %1136 = vmatprep.subr.bf16.mxu0 0
    %1137 = vmatpush1.bf16.msra.mxu0 %v1117
    %1138 = vmatprep.subr.bf16.mxu0 0
    %1139 = vmatpush1.bf16.msra.mxu0 %v1118
    %1140 = vmatprep.subr.bf16.mxu0 0
    %1141 = vmatpush1.bf16.msra.mxu0 %v1119
    %1142 = vmatprep.subr.bf16.mxu0 0
    %1143 = vmatpush1.bf16.msra.mxu0 %v1120
    %1144 = vmatprep.subr.bf16.mxu0 0
    %1145 = vmatpush1.bf16.msra.mxu0 %v1121
    %1146 = vmatprep.subr.bf16.mxu0 0
    %1147 = vmatpush1.bf16.msra.mxu0 0
    %1148 = vmatprep.subr.bf16.mxu0 0
    %1149 = vmatpush1.bf16.msra.mxu0 0
    %1150 = vmatprep.subr.bf16.mxu0 0
    %1151 = vmatpush1.bf16.msra.mxu0 0
    %1152 = vmatprep.subr.bf16.mxu0 0
    %1153 = vmatpush1.bf16.msra.mxu0 0
    %1154 = vmatprep.subr.bf16.mxu0 0
    %1155 = vmatpush1.bf16.msra.mxu0 0
    %1156 = vmatprep.subr.bf16.mxu0 0
    %1157 = vmatpush1.bf16.msra.mxu0 0
    %1158 = vmatprep.subr.bf16.mxu0 0
    %1159 = vmatpush1.bf16.msra.mxu0 0
    %1160 = vmatprep.subr.bf16.mxu0 0
    %1161 = vmatpush1.bf16.msra.mxu0 0
    %1162 = vmatprep.mubr.bf16.mxu0 0
    %1163 = vmatmul.mubr.bf16.gmra.mrb[0].mxu0 %v1058
    %v1164 = vpop.f32.mrb[0].mxu0
    %v1165 = vadd.f32 %v1080, %v1164
    %v1166 = vpop.f32.mrb[0].mxu0
    %v1167 = vpop.f32.mrb[0].mxu0
    %v1168 = vpop.f32.mrb[0].mxu0
    %1169 = vdwg.mxu0
    %v1170 = vmax.f32 %v1165, 0.0
    %v1171 = vpack.c.bf16 %v1170, %v1170
    %v1172 = vld [vmem:[#allocation11] sm:$0xf]
    %v1173 = vld [vmem:[#allocation11 + $0x4] sm:$0xf]
    %v1174 = vld [vmem:[#allocation11 + $0x8] sm:$0xf]
    %v1175 = vld [vmem:[#allocation11 + $0xc] sm:$0xf]
    %v1176 = vld [vmem:[#allocation11 + $0x10] sm:$0xf]
    %v1177 = vld [vmem:[#allocation11 + $0x14] sm:$0xf]
    %v1178 = vld [vmem:[#allocation11 + $0x18] sm:$0xf]
    %v1179 = vld [vmem:[#allocation11 + $0x1c] sm:$0xf]
    %v1180 = vld [vmem:[#allocation11 + $0x20] sm:$0xf]
    %v1181 = vld [vmem:[#allocation11 + $0x24] sm:$0xf]
    %v1182 = vld [vmem:[#allocation11 + $0x28] sm:$0xf]
    %v1183 = vld [vmem:[#allocation11 + $0x2c] sm:$0xf]
    %v1184 = vld [vmem:[#allocation11 + $0x30] sm:$0xf]
    %v1185 = vld [vmem:[#allocation11 + $0x34] sm:$0xf]
    %v1186 = vld [vmem:[#allocation11 + $0x38] sm:$0xf]
    %v1187 = vld [vmem:[#allocation11 + $0x3c] sm:$0xf]
    %v1188 = vld [vmem:[%s10] sm:$0x1]
    %v1190 = vlaneseq
    %v1191 = vshrl.u32 %v1190, 7
    %v1192 = vsub.s32 0, %v1191
    %v1193 = vrot.slane %v1188, %v1192
    %v1211 = vunpack.c.l.b16 %v1172
    %v1212 = vunpack.c.l.b16 %v1173
    %v1213 = vunpack.c.l.b16 %v1174
    %v1214 = vunpack.c.l.b16 %v1175
    %v1215 = vunpack.c.l.b16 %v1176
    %v1216 = vunpack.c.l.b16 %v1177
    %v1217 = vunpack.c.l.b16 %v1178
    %v1218 = vunpack.c.l.b16 %v1179
    %v1219 = vunpack.c.l.b16 %v1180
    %v1220 = vunpack.c.l.b16 %v1181
    %v1221 = vunpack.c.l.b16 %v1182
    %v1222 = vunpack.c.l.b16 %v1183
    %v1223 = vunpack.c.l.b16 %v1184
    %v1224 = vunpack.c.l.b16 %v1185
    %v1225 = vunpack.c.l.b16 %v1186
    %v1226 = vunpack.c.l.b16 %v1187
    %v1227 = vpack.c.b16 %v1212, %v1211
    %v1228 = vpack.c.b16 %v1214, %v1213
    %v1229 = vpack.c.b16 %v1216, %v1215
    %v1230 = vpack.c.b16 %v1218, %v1217
    %v1231 = vpack.c.b16 %v1220, %v1219
    %v1232 = vpack.c.b16 %v1222, %v1221
    %v1233 = vpack.c.b16 %v1224, %v1223
    %v1234 = vpack.c.b16 %v1226, %v1225
    %1243 = vmatprep.subr.bf16.mxu0 0
    %1244 = vmatpush1.bf16.msra.mxu0 %v1227
    %1245 = vmatprep.subr.bf16.mxu0 0
    %1246 = vmatpush1.bf16.msra.mxu0 %v1228
    %1247 = vmatprep.subr.bf16.mxu0 0
    %1248 = vmatpush1.bf16.msra.mxu0 %v1229
    %1249 = vmatprep.subr.bf16.mxu0 0
    %1250 = vmatpush1.bf16.msra.mxu0 %v1230
    %1251 = vmatprep.subr.bf16.mxu0 0
    %1252 = vmatpush1.bf16.msra.mxu0 %v1231
    %1253 = vmatprep.subr.bf16.mxu0 0
    %1254 = vmatpush1.bf16.msra.mxu0 %v1232
    %1255 = vmatprep.subr.bf16.mxu0 0
    %1256 = vmatpush1.bf16.msra.mxu0 %v1233
    %1257 = vmatprep.subr.bf16.mxu0 0
    %1258 = vmatpush1.bf16.msra.mxu0 %v1234
    %1259 = vmatprep.subr.bf16.mxu0 0
    %1260 = vmatpush1.bf16.msra.mxu0 0
    %1261 = vmatprep.subr.bf16.mxu0 0
    %1262 = vmatpush1.bf16.msra.mxu0 0
    %1263 = vmatprep.subr.bf16.mxu0 0
    %1264 = vmatpush1.bf16.msra.mxu0 0
    %1265 = vmatprep.subr.bf16.mxu0 0
    %1266 = vmatpush1.bf16.msra.mxu0 0
    %1267 = vmatprep.subr.bf16.mxu0 0
    %1268 = vmatpush1.bf16.msra.mxu0 0
    %1269 = vmatprep.subr.bf16.mxu0 0
    %1270 = vmatpush1.bf16.msra.mxu0 0
    %1271 = vmatprep.subr.bf16.mxu0 0
    %1272 = vmatpush1.bf16.msra.mxu0 0
    %1273 = vmatprep.subr.bf16.mxu0 0
    %1274 = vmatpush1.bf16.msra.mxu0 0
    %1275 = vmatprep.mubr.bf16.mxu0 0
    %1276 = vmatmul.mubr.bf16.gmra.mrb[0].mxu0 %v1171
    %v1277 = vpop.f32.mrb[0].mxu0
    %v1278 = vadd.f32 %v1193, %v1277
    %v1279 = vpop.f32.mrb[0].mxu0
    %v1280 = vpop.f32.mrb[0].mxu0
    %v1281 = vpop.f32.mrb[0].mxu0
    %1282 = vdwg.mxu0
    %1283 = vst [vmem:[#allocation13] sm:$0xff] %v1278
    // Predicated region
    $region70: #{tpu_custom_call.1} parent=1 // pred_check
      _
    $region71: #{tpu_custom_call.1} parent=1 // pred_check_branch
      %1285 = sbr.rel (0) target = $region73
    $region72: #{tpu_custom_call.1} parent=1 // pred_region
      %s1287 = ssub.s32 128, 128
      %1288 = vsyncadd [#allocation4], %s1287
      %s1290 = sshll.u32 [#allocation13], 4
      %s1291 = int_to_ptr.vmem [resolvable:$true] %s1290
      %1293 = dma.vmem_to_hbm [thread:$0]  %s1291, 128, %s11, [#allocation4]
    $region73: #{tpu_custom_call.1} parent=1 // pred_fallthru
      _
    // Predicated region
    $region74: #{tpu_custom_call.1} parent=1 // pred_check
      _
    $region75: #{tpu_custom_call.1} parent=1 // pred_check_branch
      %1295 = sbr.rel (0) target = $region77
    $region76: #{tpu_custom_call.1} parent=1 // pred_region
      %1296 = dma.done [#allocation4], 128
    $region77: #{tpu_custom_call.1} parent=1 // pred_fallthru
      _
    %1297 = vsyncpa [#allocation3], 1
    %1298 = vsyncpa [#allocation6], 1
    %1299 = vsyncpa [#allocation9], 1
    %1300 = vsyncpa [#allocation12], 1
    %1301 = vsyncpa [#allocation4], 1

</llo_original>
